<compile_context>
chip_gen: v7x
topology: tpu7x:2x2x1
jax: 0.10.0
libtpu: 0.0.40
codegen_flags: <defaults>
</compile_context>

<pallas_src>
import functools

import jax
import jax.numpy as jnp
from jax.experimental import pallas as pl
from jax.experimental.pallas import tpu as pltpu


def _round_up(x, m):
    return (x + m - 1) // m * m


def _pad_to(x, shape):
    x = x.astype(jnp.float32)
    if tuple(x.shape) == tuple(shape):
        return x
    pads = [(0, s - d) for s, d in zip(shape, x.shape)]
    return jnp.pad(x, pads)


def _grounding_kernel(text_ref, vis_ref, prob_ref, w_ref, out_ref, vn_ref,
                      *, n_valid, n_padded, mm_dtype):
    # text_ref: (1, tM, Dp), vis_ref: (1, Np, Dp), prob_ref: (1, tM, Np),
    # w_ref: (Dp, Dp) original Linear weight (not pre-transposed),
    # vn_ref: VMEM scratch (Np, Dp) holding the normalized projected visuals.
    eps = jnp.float32(1e-24)
    m_idx = pl.program_id(1)

    # The projection + normalization only depends on the batch index, so do it
    # once per batch element (first M tile) and reuse from scratch afterwards.
    @pl.when(m_idx == 0)
    def _():
        x = vis_ref[0]                                           # [Np, Dp] f32
        w = w_ref[...]                                           # [Dp, Dp] f32
        # Linear (no bias): v = x @ W.T. Contract the last dims of both
        # operands so the MXU handles the transposed RHS natively.
        v = jax.lax.dot_general(
            x.astype(mm_dtype), w.astype(mm_dtype),
            dimension_numbers=(((1,), (1,)), ((), ())),
            preferred_element_type=jnp.float32)                  # [Np, Dp] f32
        # rsqrt on the EUP instead of divide-by-sqrt on the VALU. The clamp
        # keeps zero-norm padded rows finite (their logits stay 0 / masked).
        v_inv = jax.lax.rsqrt(
            jnp.maximum(jnp.sum(v * v, axis=-1, keepdims=True), eps))  # [Np,1]
        vn_ref[...] = (v * v_inv).astype(vn_ref.dtype)           # [Np, Dp]

    t = text_ref[0]                                              # [tM, Dp] f32
    prior = prob_ref[0]                                          # [tM, Np] f32

    t_inv = jax.lax.rsqrt(
        jnp.maximum(jnp.sum(t * t, axis=-1, keepdims=True), eps))      # [tM,1]

    # g = t @ v_n.T via dot_general on the last dims (no explicit transpose).
    g = jax.lax.dot_general(
        t.astype(mm_dtype), vn_ref[...],
        dimension_numbers=(((1,), (1,)), ((), ())),
        preferred_element_type=jnp.float32)                      # [tM, Np]

    # Fold the text-side normalization and the 100x temperature into a single
    # per-row (broadcast-over-lanes) scale.
    logits = g * (100.0 * t_inv)                                 # [tM, Np]

    # Exclude padded box columns from the logsumexp.
    if n_valid < n_padded:
        col = jax.lax.broadcasted_iota(jnp.int32, logits.shape, 1)
        logits = jnp.where(col < n_valid, logits, jnp.float32(-1e30))

    # Stable logsumexp over the box axis.
    m = jnp.max(logits, axis=-1, keepdims=True)
    lse = m + jnp.log(jnp.sum(jnp.exp(logits - m), axis=-1, keepdims=True))

    out_ref[0] = logits - lse + prior


def visual_object_grounding_bayesian(text_feature, visual_features, prob, weight,
                                     *, m_tile=256, use_bf16_matmul=False):
    """text_feature [B,M,D], visual_features [B,N,D], prob [B,M,N], weight [D,D].

    Returns (semantic_logprob [B,M,N], visual_features), matching the PyTorch
    module's forward. `use_bf16_matmul` trades a little accuracy for MXU
    throughput on v6e/v7x (accumulation stays f32).
    """
    B, M, D = text_feature.shape
    _, N, _ = visual_features.shape
    assert prob.shape == (B, M, N)
    assert weight.shape == (D, D)

    # (8,128)-aligned, lane-dense padding.
    Dp = _round_up(D, 128)
    Np = _round_up(N, 128)
    tM = min(_round_up(M, 8), _round_up(m_tile, 8))
    Mp = _round_up(M, tM)

    t_p = _pad_to(text_feature, (B, Mp, Dp))
    v_p = _pad_to(visual_features, (B, Np, Dp))
    p_p = _pad_to(prob, (B, Mp, Np))
    w_p = _pad_to(weight, (Dp, Dp))

    mm_dtype = jnp.bfloat16 if use_bf16_matmul else jnp.float32

    # Explicit VMEM budget: double-buffered tiles + weight + v_n scratch,
    # clamped so it also fits v7x's 64 MiB physical VMEM.
    mm_bytes = 2 if use_bf16_matmul else 4
    blk_bytes = (2 * tM * Dp * 4 + Np * Dp * 4 + 2 * tM * Np * 4 * 2
                 + Dp * Dp * 4 + Np * Dp * mm_bytes)
    vmem_limit = int(min(max(2 * blk_bytes, 32 * 1024 * 1024), 56 * 1024 * 1024))

    kernel = functools.partial(_grounding_kernel, n_valid=N, n_padded=Np,
                               mm_dtype=mm_dtype)

    out_padded = pl.pallas_call(
        kernel,
        out_shape=jax.ShapeDtypeStruct((B, Mp, Np), jnp.float32),
        grid_spec=pltpu.PrefetchScalarGridSpec(
            num_scalar_prefetch=0,
            grid=(B, Mp // tM),
            in_specs=[
                pl.BlockSpec((1, tM, Dp), lambda b, m: (b, m, 0)),   # text
                pl.BlockSpec((1, Np, Dp), lambda b, m: (b, 0, 0)),   # visual (resident over m)
                pl.BlockSpec((1, tM, Np), lambda b, m: (b, m, 0)),   # prior
                pl.BlockSpec((Dp, Dp), lambda b, m: (0, 0)),         # weight (resident)
            ],
            out_specs=pl.BlockSpec((1, tM, Np), lambda b, m: (b, m, 0)),
            scratch_shapes=[pltpu.VMEM((Np, Dp), mm_dtype)],          # normalized v
        ),
        compiler_params=pltpu.CompilerParams(
            # M axis must run in order (scratch filled at m == 0); batch axis
            # stays parallel for megacore sharding.
            dimension_semantics=("parallel", "arbitrary"),
            vmem_limit_bytes=vmem_limit,
        ),
    )(t_p, v_p, p_p, w_p)

    semantic_logprob = out_padded[:, :M, :N]
    return semantic_logprob, visual_features


def _reference(text_feature, visual_features, prob, weight):
    # Pure-JAX reference of the same forward (per-batch lists stacked on axis 0).
    v = jnp.einsum("bnd,ed->bne", visual_features, weight)          # Linear, no bias
    v_n = v / jnp.linalg.norm(v, axis=-1, keepdims=True)
    t_n = text_feature / jnp.linalg.norm(text_feature, axis=-1, keepdims=True)
    logits = 100.0 * jnp.einsum("bmd,bnd->bmn", t_n, v_n)
    lse = jax.scipy.special.logsumexp(logits, axis=-1, keepdims=True)
    return logits - lse + prob


if __name__ == "__main__":
    B, M, N, D = 2, 8, 8, 32  # batch, text queries, boxes, embd_dim

    key = jax.random.PRNGKey(0)
    k1, k2, k3, k4 = jax.random.split(key, 4)

    text_feature = jax.random.normal(k1, (B, M, D), dtype=jnp.float32)
    visual_features = jax.random.normal(k2, (B, N, D), dtype=jnp.float32)
    prob = jax.nn.log_softmax(
        jax.random.normal(k3, (B, M, N), dtype=jnp.float32), axis=-1)
    # Linear weight init as in _init_weights: normal(mean=0, std=0.2), no bias.
    weight = 0.2 * jax.random.normal(k4, (D, D), dtype=jnp.float32)

    out, vis_out = visual_object_grounding_bayesian(
        text_feature, visual_features, prob, weight)
    out = jax.block_until_ready(out)

    ref = _reference(text_feature, visual_features, prob, weight)
    max_err = float(jnp.max(jnp.abs(out - ref)))
    assert jnp.allclose(out, ref, atol=1e-3, rtol=1e-3), (
        f"mismatch vs reference, max abs err {max_err}")
    assert vis_out is visual_features  # passthrough, as in the PyTorch module

    print("KERNEL_OK")
</pallas_src>

<mosaic_0001>
module attributes {stable_mosaic.version = 11 : i64} {
  func.func @_grounding_kernel(%arg0: i32, %arg1: i32, %arg2: memref<1x8x128xf32, #tpu.memory_space<vmem>>, %arg3: memref<1x128x128xf32, #tpu.memory_space<vmem>>, %arg4: memref<1x8x128xf32, #tpu.memory_space<vmem>>, %arg5: memref<128x128xf32, #tpu.memory_space<vmem>>, %arg6: memref<1x8x128xf32, #tpu.memory_space<vmem>>, %arg7: memref<128x128xf32, #tpu.memory_space<vmem>>) attributes {dimension_semantics = [#tpu.dimension_semantics<parallel>, #tpu.dimension_semantics<arbitrary>], iteration_bounds = array<i64: 2, 1>, scalar_prefetch = 0 : i64, scratch_operands = 1 : i64, tpu.core_type = #tpu.core_type<tc>, window_params = [{transform_indices = @transform_0, window_bounds = array<i64: 1, 8, 128>}, {transform_indices = @transform_1, window_bounds = array<i64: 1, 128, 128>}, {transform_indices = @transform_2, window_bounds = array<i64: 1, 8, 128>}, {pipeline_mode = #tpu.pipeline_mode<synchronous>, transform_indices = @transform_3, window_bounds = array<i64: 128, 128>}, {transform_indices = @transform_4, window_bounds = array<i64: 1, 8, 128>}]} {
    %c0_i32 = arith.constant 0 : i32
    %0 = arith.cmpi eq, %arg1, %c0_i32 : i32
    %1 = arith.extui %0 : i1 to i32
    %cst = arith.constant 1.000000e-24 : f32
    %c0_i32_0 = arith.constant 0 : i32
    %2 = arith.cmpi ne, %1, %c0_i32_0 : i32
    scf.if %2 {
      %c0_18 = arith.constant 0 : index
      %c0_19 = arith.constant 0 : index
      %c0_20 = arith.constant 0 : index
      %39 = vector.load %arg3[%c0_18, %c0_19, %c0_20] : memref<1x128x128xf32, #tpu.memory_space<vmem>>, vector<1x128x128xf32>
      %40 = vector.shape_cast %39 : vector<1x128x128xf32> to vector<128x128xf32>
      %c0_21 = arith.constant 0 : index
      %c0_22 = arith.constant 0 : index
      %41 = vector.load %arg5[%c0_21, %c0_22] : memref<128x128xf32, #tpu.memory_space<vmem>>, vector<128x128xf32>
      %cst_23 = arith.constant dense<0.000000e+00> : vector<128x128xf32>
      %42 = tpu.matmul %40, %41, %cst_23 {dimension_numbers = #tpu.dot_dimension_numbers<[1], [1], [0], [0], [0, 0, 1, 0], [], []>} : vector<128x128xf32>, vector<128x128xf32>, vector<128x128xf32> -> vector<128x128xf32>
      %43 = arith.mulf %42, %42 : vector<128x128xf32>
      %cst_24 = arith.constant dense<0.000000e+00> : vector<128xf32>
      %44 = vector.multi_reduction <add>, %43, %cst_24 [1] : vector<128x128xf32> to vector<128xf32>
      %45 = vector.shape_cast %44 : vector<128xf32> to vector<128x1xf32>
      %46 = vector.broadcast %cst : f32 to vector<128x1xf32>
      %47 = arith.maximumf %45, %46 : vector<128x1xf32>
      %48 = math.rsqrt %47 : vector<128x1xf32>
      %49 = vector.broadcast %48 : vector<128x1xf32> to vector<128x128xf32>
      %50 = arith.mulf %42, %49 : vector<128x128xf32>
      %c0_25 = arith.constant 0 : index
      %c0_26 = arith.constant 0 : index
      %51 = vector.load %arg7[%c0_25, %c0_26] : memref<128x128xf32, #tpu.memory_space<vmem>>, vector<128x128xf32>
      tpu.vector_store %arg7[%c0_25, %c0_26], %50 {strides = array<i32>} : memref<128x128xf32, #tpu.memory_space<vmem>>, vector<128x128xf32>,
    } else {
    }
    %c0 = arith.constant 0 : index
    %c0_1 = arith.constant 0 : index
    %c0_2 = arith.constant 0 : index
    %3 = vector.load %arg2[%c0, %c0_1, %c0_2] : memref<1x8x128xf32, #tpu.memory_space<vmem>>, vector<1x8x128xf32>
    %4 = vector.shape_cast %3 : vector<1x8x128xf32> to vector<8x128xf32>
    %c0_3 = arith.constant 0 : index
    %c0_4 = arith.constant 0 : index
    %c0_5 = arith.constant 0 : index
    %5 = vector.load %arg4[%c0_3, %c0_4, %c0_5] : memref<1x8x128xf32, #tpu.memory_space<vmem>>, vector<1x8x128xf32>
    %6 = vector.shape_cast %5 : vector<1x8x128xf32> to vector<8x128xf32>
    %7 = arith.mulf %4, %4 : vector<8x128xf32>
    %cst_6 = arith.constant dense<0.000000e+00> : vector<8xf32>
    %8 = vector.multi_reduction <add>, %7, %cst_6 [1] : vector<8x128xf32> to vector<8xf32>
    %9 = vector.shape_cast %8 : vector<8xf32> to vector<8x1xf32>
    %cst_7 = arith.constant 1.000000e-24 : f32
    %10 = vector.broadcast %cst_7 : f32 to vector<8x1xf32>
    %11 = arith.maximumf %9, %10 : vector<8x1xf32>
    %12 = math.rsqrt %11 : vector<8x1xf32>
    %c0_8 = arith.constant 0 : index
    %c0_9 = arith.constant 0 : index
    %13 = vector.load %arg7[%c0_8, %c0_9] : memref<128x128xf32, #tpu.memory_space<vmem>>, vector<128x128xf32>
    %cst_10 = arith.constant dense<0.000000e+00> : vector<8x128xf32>
    %14 = tpu.matmul %4, %13, %cst_10 {dimension_numbers = #tpu.dot_dimension_numbers<[1], [1], [0], [0], [0, 0, 1, 0], [], []>} : vector<8x128xf32>, vector<128x128xf32>, vector<8x128xf32> -> vector<8x128xf32>
    %cst_11 = arith.constant 1.000000e+02 : f32
    %15 = vector.broadcast %cst_11 : f32 to vector<8x1xf32>
    %16 = arith.mulf %15, %12 : vector<8x1xf32>
    %17 = vector.broadcast %16 : vector<8x1xf32> to vector<8x128xf32>
    %18 = arith.mulf %14, %17 : vector<8x128xf32>
    %19 = tpu.iota {dimensions = array<i32: 1>} : vector<8x128xi32>
    %c8_i32 = arith.constant 8 : i32
    %20 = vector.broadcast %c8_i32 : i32 to vector<8x128xi32>
    %21 = arith.cmpi slt, %19, %20 : vector<8x128xi32>
    %cst_12 = arith.constant -1.000000e+30 : f32
    %22 = vector.broadcast %cst_12 : f32 to vector<8x128xf32>
    %23 = arith.select %21, %18, %22 : vector<8x128xi1>, vector<8x128xf32>
    %cst_13 = arith.constant dense<0xFF800000> : vector<8xf32>
    %24 = vector.multi_reduction <maximumf>, %23, %cst_13 [1] : vector<8x128xf32> to vector<8xf32>
    %25 = vector.shape_cast %24 : vector<8xf32> to vector<8x1xf32>
    %26 = vector.broadcast %25 : vector<8x1xf32> to vector<8x128xf32>
    %27 = arith.subf %23, %26 : vector<8x128xf32>
    %28 = math.exp %27 : vector<8x128xf32>
    %cst_14 = arith.constant dense<0.000000e+00> : vector<8xf32>
    %29 = vector.multi_reduction <add>, %28, %cst_14 [1] : vector<8x128xf32> to vector<8xf32>
    %30 = vector.shape_cast %29 : vector<8xf32> to vector<8x1xf32>
    %31 = math.log %30 : vector<8x1xf32>
    %32 = arith.addf %25, %31 : vector<8x1xf32>
    %33 = vector.broadcast %32 : vector<8x1xf32> to vector<8x128xf32>
    %34 = arith.subf %23, %33 : vector<8x128xf32>
    %35 = arith.addf %34, %6 : vector<8x128xf32>
    %c0_15 = arith.constant 0 : index
    %c0_16 = arith.constant 0 : index
    %c0_17 = arith.constant 0 : index
    %36 = vector.load %arg6[%c0_15, %c0_16, %c0_17] : memref<1x8x128xf32, #tpu.memory_space<vmem>>, vector<1x8x128xf32>
    %37 = vector.shape_cast %36 : vector<1x8x128xf32> to vector<8x128xf32>
    %38 = vector.shape_cast %35 : vector<8x128xf32> to vector<1x8x128xf32>
    tpu.vector_store %arg6[%c0_15, %c0_16, %c0_17], %38 {strides = array<i32>} : memref<1x8x128xf32, #tpu.memory_space<vmem>>, vector<1x8x128xf32>,
    return
  }
  func.func @transform_0(%arg0: i32, %arg1: i32) -> (i32, i32, i32) {
    %c0_i32 = arith.constant 0 : i32
    %c0_i32_0 = arith.constant 0 : i32
    return %arg0, %arg1, %c0_i32 : i32, i32, i32
  }
  func.func @transform_1(%arg0: i32, %arg1: i32) -> (i32, i32, i32) {
    %c0_i32 = arith.constant 0 : i32
    %c0_i32_0 = arith.constant 0 : i32
    %c0_i32_1 = arith.constant 0 : i32
    return %arg0, %c0_i32, %c0_i32_0 : i32, i32, i32
  }
  func.func @transform_2(%arg0: i32, %arg1: i32) -> (i32, i32, i32) {
    %c0_i32 = arith.constant 0 : i32
    %c0_i32_0 = arith.constant 0 : i32
    return %arg0, %arg1, %c0_i32 : i32, i32, i32
  }
  func.func @transform_3(%arg0: i32, %arg1: i32) -> (i32, i32) {
    %c0_i32 = arith.constant 0 : i32
    %c0_i32_0 = arith.constant 0 : i32
    %c0_i32_1 = arith.constant 0 : i32
    return %c0_i32, %c0_i32_0 : i32, i32
  }
  func.func @transform_4(%arg0: i32, %arg1: i32) -> (i32, i32, i32) {
    %c0_i32 = arith.constant 0 : i32
    %c0_i32_0 = arith.constant 0 : i32
    return %arg0, %arg1, %c0_i32 : i32, i32, i32
  }
}

</mosaic_0001>

<llo_original>
// kernel: tpu_custom_call.1
$region0: #{tpu_custom_call.1}
  #allocation0 [shape = 'u32[]', space=smem, size = 0x4, offset = 0x4, fixed_abs, tag = 'smem constant byte address 0x4 - core index']
  #allocation1 [shape = 'u32[144,128]{1,0:T(1,128)}', space=vmem, size = 0x12000, scoped, tag = 'internal scratch']
  #allocation2 [shape = 'f32[128,128]{1,0:T(8,128)}', space=vmem, size = 0x10000, scoped, tag = 'scratch operand']
  %s0 = inlined_call_operand.hbm [shape: f32[2,8,128], index: 0, kind: input, shape index: {}]
  %s1 = inlined_call_operand.hbm [shape: f32[2,128,128], index: 1, kind: input, shape index: {}]
  %s2 = inlined_call_operand.hbm [shape: f32[2,8,128], index: 2, kind: input, shape index: {}]
  %s3 = inlined_call_operand.hbm [shape: f32[128,128], index: 3, kind: input, shape index: {}]
  %s4 = inlined_call_operand.hbm [shape: f32[2,8,128], index: 4, kind: output, shape index: {}]
  %s5 = sld [smem:[#allocation0]]
  $region69: #{tpu_custom_call.1} parent=0
    _
  %s7 = ssub.s32 1, %s5
  %s8 = scalar_select 0, %s7, %s5
  $region1: #{tpu_custom_call.1} parent=0
    #allocation3 [shape = 'u8[8192]{0}', space=vmem, size = 0x2000, scoped, tag = 'input window, operand 0']
    #allocation4 [shape = 's32[2]{0}', space=sflag, size = 0x8, scoped, tag = 'scoped memory for tpu_custom_call.1']
    #allocation5 [shape = 's32[2]{0}', space=sflag, size = 0x8, scoped, tag = 'scoped memory for tpu_custom_call.1']
    #allocation6 [shape = 'u8[131072]{0}', space=vmem, size = 0x20000, scoped, tag = 'input window, operand 1']
    #allocation7 [shape = 's32[2]{0}', space=sflag, size = 0x8, scoped, tag = 'scoped memory for tpu_custom_call.1']
    #allocation8 [shape = 'u8[8192]{0}', space=vmem, size = 0x2000, scoped, tag = 'input window, operand 2']
    #allocation9 [shape = 'u8[65536]{0}', space=vmem, size = 0x10000, scoped, tag = 'input window, operand 3, single buffered']
    #allocation10 [shape = 's32[1]{0}', space=sflag, size = 0x4, scoped, tag = 'scoped memory for tpu_custom_call.1']
    #allocation11 [shape = 'u8[8192]{0}', space=vmem, size = 0x2000, scoped, tag = 'output window, operand 0']
    %9 = vsyncpa [#allocation4], 0
    %s10 = scalar_lea.sflag [#allocation4], 1
    %11 = vsyncpa %s10, 0
    %12 = vsyncpa [#allocation7], 0
    %s13 = scalar_lea.sflag [#allocation7], 1
    %14 = vsyncpa %s13, 0
    %15 = vsyncpa [#allocation10], 0
    %16 = vsyncpa [#allocation5], 0
    %s17 = scalar_lea.sflag [#allocation5], 1
    %18 = vsyncpa %s17, 0
    loop: start=0, step=1, limit=4
    $region2: #{tpu_custom_call.1} parent=1 // loop_pre_header
      _
    $region3: #{tpu_custom_call.1} parent=1 // loop_header
      %s20 = sphi 0, %s24
      %p21 = scmp.ge.s32.totalorder %s20, 4
      %s27 = sphi 0, %s39
      %s28 = sphi 0, %s35
      %s29 = sphi 0, %s27
      %s30 = sphi 0, %s28
      %s31 = sphi 0, %s29
      %s32 = sphi 0, %s30
      %s44 = sphi 0, %s46
      %s47 = sphi 0, %s44
      %s48 = sphi 0, %s47
      %s64 = sphi 0, %s48
      %s70 = sphi 0, %s72
      %s73 = sphi 0, %s70
      %s74 = sphi 0, %s73
      %s90 = sphi 0, %s74
      %s98 = sphi 0, %s100
      %s101 = sphi 0, %s98
      %s102 = sphi 0, %s101
      %s118 = sphi 0, %s102
      %s122 = sphi 0, %s122
      %s124 = sphi 0, %s122
      %s125 = sphi 0, %s124
      %s139 = sphi 0, %s125
      %s147 = sphi 0, %s149
      %s150 = sphi 0, %s147
      %s151 = sphi 0, %s150
      %s167 = sphi 0, %s151
    $region4: #{tpu_custom_call.1} parent=1 // loop_header_branch
      %23 = sbr.rel (%p21) target = $region8
    $region5: #{tpu_custom_call.1} parent=1 // loop_body
      %s25 = ssub.s32 %s20, 1
      %s26 = ssub.s32 %s20, 2
      %s33 = sadd.s32 1, %s28
      %p34 = scmp.ge.s32.totalorder %s33, 1
      %s35 = scalar_select %p34, 0, %s33
      %s36 = sadd.s32 1, %s27
      %s37 = scalar_select %p34, %s36, %s27
      %p38 = scmp.ge.s32.totalorder %s37, 2
      %s39 = scalar_select %p38, 0, %s37
      %s40 = ssub.s32 %s27, %s39
      %s41 = ssub.s32 %s28, %s35
      %s42 = sor.u32 %s40, %s41
      %p43 = scmp.eq.s32.totalorder %s42, 0
      %s45 = sadd.s32 %s44, 1
      %s46 = scalar_select %p43, %s44, %s45
      %p49 = pneg %p43
      %p50 = scmp.eq.s32.totalorder %s20, 1
      %p51 = por %p49, %p50
      %p52 = scmp.ne.s32.totalorder %s44, %s47
      %p53 = scmp.eq.s32.totalorder %s20, 0
      %p54 = por %p52, %p53
      %p55 = scmp.ne.s32.totalorder %s44, %s47
      %p56 = scmp.eq.s32.totalorder %s25, 1
      %p57 = por %p55, %p56
      %p58 = scmp.ne.s32.totalorder %s47, %s48
      %p59 = scmp.eq.s32.totalorder %s25, 0
      %p60 = por %p58, %p59
      %p61 = scmp.ne.s32.totalorder %s47, %s48
      %p62 = scmp.eq.s32.totalorder %s26, 1
      %p63 = por %p61, %p62
      %p65 = scmp.ne.s32.totalorder %s48, %s64
      %p66 = scmp.eq.s32.totalorder %s26, 0
      %p67 = por %p65, %p66
      %s68 = ssub.s32 %s27, %s39
      %p69 = scmp.eq.s32.totalorder %s68, 0
      %s71 = sadd.s32 %s70, 1
      %s72 = scalar_select %p69, %s70, %s71
      %p75 = pneg %p69
      %p76 = scmp.eq.s32.totalorder %s20, 1
      %p77 = por %p75, %p76
      %p78 = scmp.ne.s32.totalorder %s70, %s73
      %p79 = scmp.eq.s32.totalorder %s20, 0
      %p80 = por %p78, %p79
      %p81 = scmp.ne.s32.totalorder %s70, %s73
      %p82 = scmp.eq.s32.totalorder %s25, 1
      %p83 = por %p81, %p82
      %p84 = scmp.ne.s32.totalorder %s73, %s74
      %p85 = scmp.eq.s32.totalorder %s25, 0
      %p86 = por %p84, %p85
      %p87 = scmp.ne.s32.totalorder %s73, %s74
      %p88 = scmp.eq.s32.totalorder %s26, 1
      %p89 = por %p87, %p88
      %p91 = scmp.ne.s32.totalorder %s74, %s90
      %p92 = scmp.eq.s32.totalorder %s26, 0
      %p93 = por %p91, %p92
      %s94 = ssub.s32 %s27, %s39
      %s95 = ssub.s32 %s28, %s35
      %s96 = sor.u32 %s94, %s95
      %p97 = scmp.eq.s32.totalorder %s96, 0
      %s99 = sadd.s32 %s98, 1
      %s100 = scalar_select %p97, %s98, %s99
      %p103 = pneg %p97
      %p104 = scmp.eq.s32.totalorder %s20, 1
      %p105 = por %p103, %p104
      %p106 = scmp.ne.s32.totalorder %s98, %s101
      %p107 = scmp.eq.s32.totalorder %s20, 0
      %p108 = por %p106, %p107
      %p109 = scmp.ne.s32.totalorder %s98, %s101
      %p110 = scmp.eq.s32.totalorder %s25, 1
      %p111 = por %p109, %p110
      %p112 = scmp.ne.s32.totalorder %s101, %s102
      %p113 = scmp.eq.s32.totalorder %s25, 0
      %p114 = por %p112, %p113
      %p115 = scmp.ne.s32.totalorder %s101, %s102
      %p116 = scmp.eq.s32.totalorder %s26, 1
      %p117 = por %p115, %p116
      %p119 = scmp.ne.s32.totalorder %s102, %s118
      %p120 = scmp.eq.s32.totalorder %s26, 0
      %p121 = por %p119, %p120
      %s123 = sadd.s32 %s122, 1
      %p126 = scmp.eq.s32.totalorder %s20, 1
      %p127 = scmp.ne.s32.totalorder %s122, %s124
      %p128 = scmp.eq.s32.totalorder %s20, 0
      %p129 = por %p127, %p128
      %p130 = scmp.ne.s32.totalorder %s122, %s124
      %p131 = scmp.eq.s32.totalorder %s25, 1
      %p132 = por %p130, %p131
      %p133 = scmp.ne.s32.totalorder %s124, %s125
      %p134 = scmp.eq.s32.totalorder %s25, 0
      %p135 = por %p133, %p134
      %p136 = scmp.ne.s32.totalorder %s124, %s125
      %p137 = scmp.eq.s32.totalorder %s26, 1
      %p138 = por %p136, %p137
      %p140 = scmp.ne.s32.totalorder %s125, %s139
      %p141 = scmp.eq.s32.totalorder %s26, 0
      %p142 = por %p140, %p141
      %s143 = ssub.s32 %s27, %s39
      %s144 = ssub.s32 %s28, %s35
      %s145 = sor.u32 %s143, %s144
      %p146 = scmp.eq.s32.totalorder %s145, 0
      %s148 = sadd.s32 %s147, 1
      %s149 = scalar_select %p146, %s147, %s148
      %p152 = pneg %p146
      %p153 = scmp.eq.s32.totalorder %s20, 1
      %p154 = por %p152, %p153
      %p155 = scmp.ne.s32.totalorder %s147, %s150
      %p156 = scmp.eq.s32.totalorder %s20, 0
      %p157 = por %p155, %p156
      %p158 = scmp.ne.s32.totalorder %s147, %s150
      %p159 = scmp.eq.s32.totalorder %s25, 1
      %p160 = por %p158, %p159
      %p161 = scmp.ne.s32.totalorder %s150, %s151
      %p162 = scmp.eq.s32.totalorder %s25, 0
      %p163 = por %p161, %p162
      %p164 = scmp.ne.s32.totalorder %s150, %s151
      %p165 = scmp.eq.s32.totalorder %s26, 1
      %p166 = por %p164, %p165
      %p168 = scmp.ne.s32.totalorder %s151, %s167
      %p169 = scmp.eq.s32.totalorder %s26, 0
      %p170 = por %p168, %p169
      %p171 = scmp.le.s32.totalorder 1, %s20
      %p172 = scmp.lt.s32.totalorder %s20, 3
      %p173 = pnand %p171, %p172
      %p174 = pneg %p173
      // Predicated region
      $region9: #{tpu_custom_call.1} parent=5 // pred_check
        _
      $region10: #{tpu_custom_call.1} parent=5 // pred_check_branch
        %176 = sbr.rel (%p173) target = $region12
      $region11: #{tpu_custom_call.1} parent=5 // pred_region
        %s177 = ssub.s32 %s20, 1
        // Predicated region
        $region13: #{tpu_custom_call.1} parent=11 // pred_check
          %p178 = pneg %p135
        $region14: #{tpu_custom_call.1} parent=11 // pred_check_branch
          %180 = sbr.rel (%p178) target = $region16
        $region15: #{tpu_custom_call.1} parent=11 // pred_region
          %s182 = ssub.s32 2048, 2048
          %183 = vsyncadd [#allocation10], %s182
          %s184 = sshll.u32 [#allocation9], 4
          %s185 = int_to_ptr.vmem [resolvable:$true] %s184
          %190 = dma.hbm_to_vmem [thread:$0]  %s3, 2048, %s185, [#allocation10], 128, 128, 8
        $region16: #{tpu_custom_call.1} parent=11 // pred_fallthru
          _
      $region12: #{tpu_custom_call.1} parent=5 // pred_fallthru
        _
      %p191 = scmp.lt.s32.totalorder %s20, 2
      // Predicated region
      $region17: #{tpu_custom_call.1} parent=5 // pred_check
        %p192 = pneg %p191
      $region18: #{tpu_custom_call.1} parent=5 // pred_check_branch
        %194 = sbr.rel (%p192) target = $region20
      $region19: #{tpu_custom_call.1} parent=5 // pred_region
        // Predicated region
        $region21: #{tpu_custom_call.1} parent=19 // pred_check
          %p195 = pneg %p54
        $region22: #{tpu_custom_call.1} parent=19 // pred_check_branch
          %197 = sbr.rel (%p195) target = $region24
        $region23: #{tpu_custom_call.1} parent=19 // pred_region
          %s198 = sand.u32 %s44, 1
          %s199 = scalar_lea.sflag [#allocation4], %s198
          %s200 = sand.u32 %s44, 1
          %s201 = smul.addr %s200, 8
          %s202 = scalar_lea.vmem [#allocation3], %s201
          %s204 = ssub.s32 128, 128
          %205 = vsyncadd %s199, %s204
          %s206 = sadd.s32 %s28, %s27
          %s207 = smul.addr %s206, 128
          %s208 = scalar_lea.hbm %s0, %s207
          %s210 = sshll.u32 %s202, 4
          %s211 = int_to_ptr.vmem [resolvable:$true] %s210
          %213 = dma.hbm_to_vmem [thread:$0]  %s208, 128, %s211, %s199
        $region24: #{tpu_custom_call.1} parent=19 // pred_fallthru
          _
        // Predicated region
        $region25: #{tpu_custom_call.1} parent=19 // pred_check
          %p214 = pneg %p80
        $region26: #{tpu_custom_call.1} parent=19 // pred_check_branch
          %216 = sbr.rel (%p214) target = $region28
        $region27: #{tpu_custom_call.1} parent=19 // pred_region
          %s217 = sand.u32 %s20, 1
          %s218 = scalar_lea.sflag [#allocation7], %s217
          %s219 = sand.u32 %s70, 1
          %s220 = smul.addr %s219, 128
          %s221 = scalar_lea.vmem [#allocation6], %s220
          %s223 = ssub.s32 2048, 2048
          %224 = vsyncadd %s218, %s223
          %s225 = smul.addr %s27, 16
          %s226 = smul.addr %s225, 128
          %s227 = scalar_lea.hbm %s1, %s226
          %s228 = sshll.u32 %s221, 4
          %s229 = int_to_ptr.vmem [resolvable:$true] %s228
          %234 = dma.hbm_to_vmem [thread:$0]  %s227, 2048, %s229, %s218, 128, 128, 8
        $region28: #{tpu_custom_call.1} parent=19 // pred_fallthru
          _
        // Predicated region
        $region29: #{tpu_custom_call.1} parent=19 // pred_check
          %p235 = pneg %p108
        $region30: #{tpu_custom_call.1} parent=19 // pred_check_branch
          %237 = sbr.rel (%p235) target = $region32
        $region31: #{tpu_custom_call.1} parent=19 // pred_region
          %s238 = sand.u32 %s20, 1
          %s239 = scalar_lea.sflag [#allocation7], %s238
          %s240 = sand.u32 %s98, 1
          %s241 = smul.addr %s240, 8
          %s242 = scalar_lea.vmem [#allocation8], %s241
          %s244 = ssub.s32 128, 128
          %245 = vsyncadd %s239, %s244
          %s246 = sadd.s32 %s28, %s27
          %s247 = smul.addr %s246, 128
          %s248 = scalar_lea.hbm %s2, %s247
          %s250 = sshll.u32 %s242, 4
          %s251 = int_to_ptr.vmem [resolvable:$true] %s250
          %253 = dma.hbm_to_vmem [thread:$0]  %s248, 128, %s251, %s239
        $region32: #{tpu_custom_call.1} parent=19 // pred_fallthru
          _
      $region20: #{tpu_custom_call.1} parent=5 // pred_fallthru
        _
      %p254 = scmp.le.s32.totalorder 1, %s20
      %p255 = scmp.lt.s32.totalorder %s20, 3
      %p256 = pnand %p254, %p255
      %p257 = pneg %p256
      // Predicated region
      $region33: #{tpu_custom_call.1} parent=5 // pred_check
        _
      $region34: #{tpu_custom_call.1} parent=5 // pred_check_branch
        %259 = sbr.rel (%p256) target = $region36
      $region35: #{tpu_custom_call.1} parent=5 // pred_region
        %s260 = ssub.s32 %s20, 1
        %s261 = sand.u32 %s47, 1
        %s262 = scalar_lea.sflag [#allocation4], %s261
        %s263 = sand.u32 %s47, 1
        %s264 = smul.addr %s263, 8
        %s265 = scalar_lea.vmem [#allocation3], %s264
        // Predicated region
        $region37: #{tpu_custom_call.1} parent=35 // pred_check
          %p266 = pneg %p60
        $region38: #{tpu_custom_call.1} parent=35 // pred_check_branch
          %268 = sbr.rel (%p266) target = $region40
        $region39: #{tpu_custom_call.1} parent=35 // pred_region
          %269 = dma.done %s262, 128
        $region40: #{tpu_custom_call.1} parent=35 // pred_fallthru
          _
        %s270 = sand.u32 %s25, 1
        %s271 = scalar_lea.sflag [#allocation7], %s270
        %s272 = sand.u32 %s73, 1
        %s273 = smul.addr %s272, 128
        %s274 = scalar_lea.vmem [#allocation6], %s273
        // Predicated region
        $region41: #{tpu_custom_call.1} parent=35 // pred_check
          %p275 = pneg %p86
        $region42: #{tpu_custom_call.1} parent=35 // pred_check_branch
          %277 = sbr.rel (%p275) target = $region44
        $region43: #{tpu_custom_call.1} parent=35 // pred_region
          %278 = dma.done %s271, 2048
        $region44: #{tpu_custom_call.1} parent=35 // pred_fallthru
          _
        %s279 = sand.u32 %s25, 1
        %s280 = scalar_lea.sflag [#allocation7], %s279
        %s281 = sand.u32 %s101, 1
        %s282 = smul.addr %s281, 8
        %s283 = scalar_lea.vmem [#allocation8], %s282
        // Predicated region
        $region45: #{tpu_custom_call.1} parent=35 // pred_check
          %p284 = pneg %p114
        $region46: #{tpu_custom_call.1} parent=35 // pred_check_branch
          %286 = sbr.rel (%p284) target = $region48
        $region47: #{tpu_custom_call.1} parent=35 // pred_region
          %287 = dma.done %s280, 128
        $region48: #{tpu_custom_call.1} parent=35 // pred_fallthru
          _
        // Predicated region
        $region49: #{tpu_custom_call.1} parent=35 // pred_check
          %p288 = pneg %p135
        $region50: #{tpu_custom_call.1} parent=35 // pred_check_branch
          %290 = sbr.rel (%p288) target = $region52
        $region51: #{tpu_custom_call.1} parent=35 // pred_region
          %291 = dma.done [#allocation10], 2048
        $region52: #{tpu_custom_call.1} parent=35 // pred_fallthru
          _
        %s292 = sand.u32 %s47, 1
        %s293 = scalar_lea.sflag [#allocation4], %s292
        %s294 = sand.u32 %s47, 1
        %s295 = smul.addr %s294, 8
        %s296 = scalar_lea.vmem [#allocation3], %s295
        %p297 = pneg %p60
        %p298 = pneg %p57
        %s299 = sand.u32 %s25, 1
        %s300 = scalar_lea.sflag [#allocation7], %s299
        %s301 = sand.u32 %s73, 1
        %s302 = smul.addr %s301, 128
        %s303 = scalar_lea.vmem [#allocation6], %s302
        %p304 = pneg %p86
        %p305 = pneg %p83
        %s306 = sand.u32 %s25, 1
        %s307 = scalar_lea.sflag [#allocation7], %s306
        %s308 = sand.u32 %s101, 1
        %s309 = smul.addr %s308, 8
        %s310 = scalar_lea.vmem [#allocation8], %s309
        %p311 = pneg %p114
        %p312 = pneg %p111
        %p313 = pneg %p135
        %p314 = pneg %p132
        %p315 = pneg %p163
        %p316 = pneg %p160
        %s317 = sand.u32 %s150, 1
        %s318 = scalar_lea.sflag [#allocation5], %s317
        %s319 = sand.u32 %s150, 1
        %s320 = smul.addr %s319, 8
        %s321 = scalar_lea.vmem [#allocation11], %s320
        %p322 = scmp.eq.s32.totalorder %s30, 0
        // Predicated region
        $region53: #{tpu_custom_call.1} parent=35 // pred_check
          %p323 = pneg %p322
        $region54: #{tpu_custom_call.1} parent=35 // pred_check_branch
          %325 = sbr.rel (%p323) target = $region56
        $region55: #{tpu_custom_call.1} parent=35 // pred_region
          %v326 = vld [vmem:[%s274] sm:$0xff]
          %v327 = vld [vmem:[%s274 + $0x8] sm:$0xff]
          %v328 = vld [vmem:[%s274 + $0x10] sm:$0xff]
          %v329 = vld [vmem:[%s274 + $0x18] sm:$0xff]
          %v330 = vld [vmem:[%s274 + $0x20] sm:$0xff]
          %v331 = vld [vmem:[%s274 + $0x28] sm:$0xff]
          %v332 = vld [vmem:[%s274 + $0x30] sm:$0xff]
          %v333 = vld [vmem:[%s274 + $0x38] sm:$0xff]
          %v334 = vld [vmem:[%s274 + $0x40] sm:$0xff]
          %v335 = vld [vmem:[%s274 + $0x48] sm:$0xff]
          %v336 = vld [vmem:[%s274 + $0x50] sm:$0xff]
          %v337 = vld [vmem:[%s274 + $0x58] sm:$0xff]
          %v338 = vld [vmem:[%s274 + $0x60] sm:$0xff]
          %v339 = vld [vmem:[%s274 + $0x68] sm:$0xff]
          %v340 = vld [vmem:[%s274 + $0x70] sm:$0xff]
          %v341 = vld [vmem:[%s274 + $0x78] sm:$0xff]
          %v342 = vld [vmem:[#allocation9] sm:$0xff]
          %v343 = vld [vmem:[#allocation9 + $0x8] sm:$0xff]
          %v344 = vld [vmem:[#allocation9 + $0x10] sm:$0xff]
          %v345 = vld [vmem:[#allocation9 + $0x18] sm:$0xff]
          %v346 = vld [vmem:[#allocation9 + $0x20] sm:$0xff]
          %v347 = vld [vmem:[#allocation9 + $0x28] sm:$0xff]
          %v348 = vld [vmem:[#allocation9 + $0x30] sm:$0xff]
          %v349 = vld [vmem:[#allocation9 + $0x38] sm:$0xff]
          %v350 = vld [vmem:[#allocation9 + $0x40] sm:$0xff]
          %v351 = vld [vmem:[#allocation9 + $0x48] sm:$0xff]
          %v352 = vld [vmem:[#allocation9 + $0x50] sm:$0xff]
          %v353 = vld [vmem:[#allocation9 + $0x58] sm:$0xff]
          %v354 = vld [vmem:[#allocation9 + $0x60] sm:$0xff]
          %v355 = vld [vmem:[#allocation9 + $0x68] sm:$0xff]
          %v356 = vld [vmem:[#allocation9 + $0x70] sm:$0xff]
          %v357 = vld [vmem:[#allocation9 + $0x78] sm:$0xff]
          %358 = vmatprep.subr.mxu0 0.0
          %359 = vmatpush1.xpose.msra.mxu0 %v342
          %360 = vmatprep.subr.mxu0 0.0
          %361 = vmatpush1.xpose.msra.mxu0 %v343
          %362 = vmatprep.subr.mxu0 0.0
          %363 = vmatpush1.xpose.msra.mxu0 %v344
          %364 = vmatprep.subr.mxu0 0.0
          %365 = vmatpush1.xpose.msra.mxu0 %v345
          %366 = vmatprep.subr.mxu0 0.0
          %367 = vmatpush1.xpose.msra.mxu0 %v346
          %368 = vmatprep.subr.mxu0 0.0
          %369 = vmatpush1.xpose.msra.mxu0 %v347
          %370 = vmatprep.subr.mxu0 0.0
          %371 = vmatpush1.xpose.msra.mxu0 %v348
          %372 = vmatprep.subr.mxu0 0.0
          %373 = vmatpush1.xpose.msra.mxu0 %v349
          %374 = vmatprep.subr.mxu0 0.0
          %375 = vmatpush1.xpose.msra.mxu0 %v350
          %376 = vmatprep.subr.mxu0 0.0
          %377 = vmatpush1.xpose.msra.mxu0 %v351
          %378 = vmatprep.subr.mxu0 0.0
          %379 = vmatpush1.xpose.msra.mxu0 %v352
          %380 = vmatprep.subr.mxu0 0.0
          %381 = vmatpush1.xpose.msra.mxu0 %v353
          %382 = vmatprep.subr.mxu0 0.0
          %383 = vmatpush1.xpose.msra.mxu0 %v354
          %384 = vmatprep.subr.mxu0 0.0
          %385 = vmatpush1.xpose.msra.mxu0 %v355
          %386 = vmatprep.subr.mxu0 0.0
          %387 = vmatpush1.xpose.msra.mxu0 %v356
          %388 = vmatprep.subr.mxu0 0.0
          %389 = vmatpush1.xpose.msra.mxu0 %v357
          %390 = vmatprep.subr.mxu0 0.0
          %391 = vmatpush1.xpose.msra.mxu0 0.0
          %392 = vmatprep.subr.mxu0 0.0
          %393 = vmatpush1.xpose.msra.mxu0 0.0
          %394 = vmatprep.subr.mxu0 0.0
          %395 = vmatpush1.xpose.msra.mxu0 0.0
          %396 = vmatprep.subr.mxu0 0.0
          %397 = vmatpush1.xpose.msra.mxu0 0.0
          %398 = vmatprep.subr.mxu0 0.0
          %399 = vmatpush1.xpose.msra.mxu0 0.0
          %400 = vmatprep.subr.mxu0 0.0
          %401 = vmatpush1.xpose.msra.mxu0 0.0
          %402 = vmatprep.subr.mxu0 0.0
          %403 = vmatpush1.xpose.msra.mxu0 0.0
          %404 = vmatprep.subr.mxu0 0.0
          %405 = vmatpush1.xpose.msra.mxu0 0.0
          %406 = vmatprep.subr.mxu0 0.0
          %407 = vmatpush1.xpose.msra.mxu0 0.0
          %408 = vmatprep.subr.mxu0 0.0
          %409 = vmatpush1.xpose.msra.mxu0 0.0
          %410 = vmatprep.subr.mxu0 0.0
          %411 = vmatpush1.xpose.msra.mxu0 0.0
          %412 = vmatprep.subr.mxu0 0.0
          %413 = vmatpush1.xpose.msra.mxu0 0.0
          %414 = vmatprep.subr.mxu0 0.0
          %415 = vmatpush1.xpose.msra.mxu0 0.0
          %416 = vmatprep.subr.mxu0 0.0
          %417 = vmatpush1.xpose.msra.mxu0 0.0
          %418 = vmatprep.subr.mxu0 0.0
          %419 = vmatpush1.xpose.msra.mxu0 0.0
          %420 = vmatprep.subr.mxu0 0.0
          %421 = vmatpush1.xpose.msra.mxu0 0.0
          %422 = vmatprep.mubr.f32.mxu0 0.0
          %423 = vmatmul.mubr.f32.gmra.mrb[0].mxu0 %v326
          %v424 = vpop.f32.mrb[0].mxu0
          %v425 = vadd.f32 0.0, %v424
          %v426 = vpop.f32.mrb[0].mxu0
          %427 = vmatprep.mubr.f32.mxu0 0.0
          %428 = vmatmul.mubr.f32.gmra.mrb[0].mxu0 %v327
          %v429 = vpop.f32.mrb[0].mxu0
          %v430 = vadd.f32 0.0, %v429
          %v431 = vpop.f32.mrb[0].mxu0
          %432 = vmatprep.mubr.f32.mxu0 0.0
          %433 = vmatmul.mubr.f32.gmra.mrb[0].mxu0 %v328
          %v434 = vpop.f32.mrb[0].mxu0
          %v435 = vadd.f32 0.0, %v434
          %v436 = vpop.f32.mrb[0].mxu0
          %437 = vmatprep.mubr.f32.mxu0 0.0
          %438 = vmatmul.mubr.f32.gmra.mrb[0].mxu0 %v329
          %v439 = vpop.f32.mrb[0].mxu0
          %v440 = vadd.f32 0.0, %v439
          %v441 = vpop.f32.mrb[0].mxu0
          %442 = vmatprep.mubr.f32.mxu0 0.0
          %443 = vmatmul.mubr.f32.gmra.mrb[0].mxu0 %v330
          %v444 = vpop.f32.mrb[0].mxu0
          %v445 = vadd.f32 0.0, %v444
          %v446 = vpop.f32.mrb[0].mxu0
          %447 = vmatprep.mubr.f32.mxu0 0.0
          %448 = vmatmul.mubr.f32.gmra.mrb[0].mxu0 %v331
          %v449 = vpop.f32.mrb[0].mxu0
          %v450 = vadd.f32 0.0, %v449
          %v451 = vpop.f32.mrb[0].mxu0
          %452 = vmatprep.mubr.f32.mxu0 0.0
          %453 = vmatmul.mubr.f32.gmra.mrb[0].mxu0 %v332
          %v454 = vpop.f32.mrb[0].mxu0
          %v455 = vadd.f32 0.0, %v454
          %v456 = vpop.f32.mrb[0].mxu0
          %457 = vmatprep.mubr.f32.mxu0 0.0
          %458 = vmatmul.mubr.f32.gmra.mrb[0].mxu0 %v333
          %v459 = vpop.f32.mrb[0].mxu0
          %v460 = vadd.f32 0.0, %v459
          %v461 = vpop.f32.mrb[0].mxu0
          %462 = vmatprep.mubr.f32.mxu0 0.0
          %463 = vmatmul.mubr.f32.gmra.mrb[0].mxu0 %v334
          %v464 = vpop.f32.mrb[0].mxu0
          %v465 = vadd.f32 0.0, %v464
          %v466 = vpop.f32.mrb[0].mxu0
          %467 = vmatprep.mubr.f32.mxu0 0.0
          %468 = vmatmul.mubr.f32.gmra.mrb[0].mxu0 %v335
          %v469 = vpop.f32.mrb[0].mxu0
          %v470 = vadd.f32 0.0, %v469
          %v471 = vpop.f32.mrb[0].mxu0
          %472 = vmatprep.mubr.f32.mxu0 0.0
          %473 = vmatmul.mubr.f32.gmra.mrb[0].mxu0 %v336
          %v474 = vpop.f32.mrb[0].mxu0
          %v475 = vadd.f32 0.0, %v474
          %v476 = vpop.f32.mrb[0].mxu0
          %477 = vmatprep.mubr.f32.mxu0 0.0
          %478 = vmatmul.mubr.f32.gmra.mrb[0].mxu0 %v337
          %v479 = vpop.f32.mrb[0].mxu0
          %v480 = vadd.f32 0.0, %v479
          %v481 = vpop.f32.mrb[0].mxu0
          %482 = vmatprep.mubr.f32.mxu0 0.0
          %483 = vmatmul.mubr.f32.gmra.mrb[0].mxu0 %v338
          %v484 = vpop.f32.mrb[0].mxu0
          %v485 = vadd.f32 0.0, %v484
          %v486 = vpop.f32.mrb[0].mxu0
          %487 = vmatprep.mubr.f32.mxu0 0.0
          %488 = vmatmul.mubr.f32.gmra.mrb[0].mxu0 %v339
          %v489 = vpop.f32.mrb[0].mxu0
          %v490 = vadd.f32 0.0, %v489
          %v491 = vpop.f32.mrb[0].mxu0
          %492 = vmatprep.mubr.f32.mxu0 0.0
          %493 = vmatmul.mubr.f32.gmra.mrb[0].mxu0 %v340
          %v494 = vpop.f32.mrb[0].mxu0
          %v495 = vadd.f32 0.0, %v494
          %v496 = vpop.f32.mrb[0].mxu0
          %497 = vmatprep.mubr.f32.mxu0 0.0
          %498 = vmatmul.mubr.f32.gmra.mrb[0].mxu0 %v341
          %v499 = vpop.f32.mrb[0].mxu0
          %v500 = vadd.f32 0.0, %v499
          %v501 = vpop.f32.mrb[0].mxu0
          %502 = vdwg.mxu0
          %v503 = vmul.f32 %v425, %v425
          %v504 = vmul.f32 %v430, %v430
          %v505 = vmul.f32 %v435, %v435
          %v506 = vmul.f32 %v440, %v440
          %v507 = vmul.f32 %v445, %v445
          %v508 = vmul.f32 %v450, %v450
          %v509 = vmul.f32 %v455, %v455
          %v510 = vmul.f32 %v460, %v460
          %v511 = vmul.f32 %v465, %v465
          %v512 = vmul.f32 %v470, %v470
          %v513 = vmul.f32 %v475, %v475
          %v514 = vmul.f32 %v480, %v480
          %v515 = vmul.f32 %v485, %v485
          %v516 = vmul.f32 %v490, %v490
          %v517 = vmul.f32 %v495, %v495
          %v518 = vmul.f32 %v500, %v500
          %519 = vadd.xlane.f32.xlu0 %v503
          %v520 = vpop.xlane.xlu0 %519
          %521 = vadd.xlane.f32.xlu0 %v504
          %v522 = vpop.xlane.xlu0 %521
          %523 = vadd.xlane.f32.xlu0 %v505
          %v524 = vpop.xlane.xlu0 %523
          %525 = vadd.xlane.f32.xlu0 %v506
          %v526 = vpop.xlane.xlu0 %525
          %527 = vadd.xlane.f32.xlu0 %v507
          %v528 = vpop.xlane.xlu0 %527
          %529 = vadd.xlane.f32.xlu0 %v508
          %v530 = vpop.xlane.xlu0 %529
          %531 = vadd.xlane.f32.xlu0 %v509
          %v532 = vpop.xlane.xlu0 %531
          %533 = vadd.xlane.f32.xlu0 %v510
          %v534 = vpop.xlane.xlu0 %533
          %535 = vadd.xlane.f32.xlu0 %v511
          %v536 = vpop.xlane.xlu0 %535
          %537 = vadd.xlane.f32.xlu0 %v512
          %v538 = vpop.xlane.xlu0 %537
          %539 = vadd.xlane.f32.xlu0 %v513
          %v540 = vpop.xlane.xlu0 %539
          %541 = vadd.xlane.f32.xlu0 %v514
          %v542 = vpop.xlane.xlu0 %541
          %543 = vadd.xlane.f32.xlu0 %v515
          %v544 = vpop.xlane.xlu0 %543
          %545 = vadd.xlane.f32.xlu0 %v516
          %v546 = vpop.xlane.xlu0 %545
          %547 = vadd.xlane.f32.xlu0 %v517
          %v548 = vpop.xlane.xlu0 %547
          %549 = vadd.xlane.f32.xlu0 %v518
          %v550 = vpop.xlane.xlu0 %549
          %v551 = vmax.f32 %v520, 1e-24
          %v552 = vmax.f32 %v522, 1e-24
          %v553 = vmax.f32 %v524, 1e-24
          %v554 = vmax.f32 %v526, 1e-24
          %v555 = vmax.f32 %v528, 1e-24
          %v556 = vmax.f32 %v530, 1e-24
          %v557 = vmax.f32 %v532, 1e-24
          %v558 = vmax.f32 %v534, 1e-24
          %v559 = vmax.f32 %v536, 1e-24
          %v560 = vmax.f32 %v538, 1e-24
          %v561 = vmax.f32 %v540, 1e-24
          %v562 = vmax.f32 %v542, 1e-24
          %v563 = vmax.f32 %v544, 1e-24
          %v564 = vmax.f32 %v546, 1e-24
          %v565 = vmax.f32 %v548, 1e-24
          %v566 = vmax.f32 %v550, 1e-24
          %v567 = vrsqrt.pop %v551
          %v568 = vrsqrt.pop %v552
          %v569 = vrsqrt.pop %v553
          %v570 = vrsqrt.pop %v554
          %v571 = vrsqrt.pop %v555
          %v572 = vrsqrt.pop %v556
          %v573 = vrsqrt.pop %v557
          %v574 = vrsqrt.pop %v558
          %v575 = vrsqrt.pop %v559
          %v576 = vrsqrt.pop %v560
          %v577 = vrsqrt.pop %v561
          %v578 = vrsqrt.pop %v562
          %v579 = vrsqrt.pop %v563
          %v580 = vrsqrt.pop %v564
          %v581 = vrsqrt.pop %v565
          %v582 = vrsqrt.pop %v566
          %v583 = vmul.f32 %v425, %v567
          %v584 = vmul.f32 %v430, %v568
          %v585 = vmul.f32 %v435, %v569
          %v586 = vmul.f32 %v440, %v570
          %v587 = vmul.f32 %v445, %v571
          %v588 = vmul.f32 %v450, %v572
          %v589 = vmul.f32 %v455, %v573
          %v590 = vmul.f32 %v460, %v574
          %v591 = vmul.f32 %v465, %v575
          %v592 = vmul.f32 %v470, %v576
          %v593 = vmul.f32 %v475, %v577
          %v594 = vmul.f32 %v480, %v578
          %v595 = vmul.f32 %v485, %v579
          %v596 = vmul.f32 %v490, %v580
          %v597 = vmul.f32 %v495, %v581
          %v598 = vmul.f32 %v500, %v582
          %599 = vst [vmem:[#allocation2] sm:$0xff] %v583
          %600 = vst [vmem:[#allocation2 + $0x8] sm:$0xff] %v584
          %601 = vst [vmem:[#allocation2 + $0x10] sm:$0xff] %v585
          %602 = vst [vmem:[#allocation2 + $0x18] sm:$0xff] %v586
          %603 = vst [vmem:[#allocation2 + $0x20] sm:$0xff] %v587
          %604 = vst [vmem:[#allocation2 + $0x28] sm:$0xff] %v588
          %605 = vst [vmem:[#allocation2 + $0x30] sm:$0xff] %v589
          %606 = vst [vmem:[#allocation2 + $0x38] sm:$0xff] %v590
          %607 = vst [vmem:[#allocation2 + $0x40] sm:$0xff] %v591
          %608 = vst [vmem:[#allocation2 + $0x48] sm:$0xff] %v592
          %609 = vst [vmem:[#allocation2 + $0x50] sm:$0xff] %v593
          %610 = vst [vmem:[#allocation2 + $0x58] sm:$0xff] %v594
          %611 = vst [vmem:[#allocation2 + $0x60] sm:$0xff] %v595
          %612 = vst [vmem:[#allocation2 + $0x68] sm:$0xff] %v596
          %613 = vst [vmem:[#allocation2 + $0x70] sm:$0xff] %v597
          %614 = vst [vmem:[#allocation2 + $0x78] sm:$0xff] %v598
        $region56: #{tpu_custom_call.1} parent=35 // pred_fallthru
          _
        %v615 = vld [vmem:[%s265] sm:$0xff]
        %v616 = vld [vmem:[%s283] sm:$0xff]
        %v617 = vmul.f32 %v615, %v615
        %618 = vadd.xlane.f32.xlu0 %v617
        %v619 = vpop.xlane.xlu0 %618
        %v620 = vmax.f32 %v619, 1e-24
        %v621 = vrsqrt.pop %v620
        %v622 = vld [vmem:[#allocation2] sm:$0xff]
        %v623 = vld [vmem:[#allocation2 + $0x8] sm:$0xff]
        %v624 = vld [vmem:[#allocation2 + $0x10] sm:$0xff]
        %v625 = vld [vmem:[#allocation2 + $0x18] sm:$0xff]
        %v626 = vld [vmem:[#allocation2 + $0x20] sm:$0xff]
        %v627 = vld [vmem:[#allocation2 + $0x28] sm:$0xff]
        %v628 = vld [vmem:[#allocation2 + $0x30] sm:$0xff]
        %v629 = vld [vmem:[#allocation2 + $0x38] sm:$0xff]
        %v630 = vld [vmem:[#allocation2 + $0x40] sm:$0xff]
        %v631 = vld [vmem:[#allocation2 + $0x48] sm:$0xff]
        %v632 = vld [vmem:[#allocation2 + $0x50] sm:$0xff]
        %v633 = vld [vmem:[#allocation2 + $0x58] sm:$0xff]
        %v634 = vld [vmem:[#allocation2 + $0x60] sm:$0xff]
        %v635 = vld [vmem:[#allocation2 + $0x68] sm:$0xff]
        %v636 = vld [vmem:[#allocation2 + $0x70] sm:$0xff]
        %v637 = vld [vmem:[#allocation2 + $0x78] sm:$0xff]
        %638 = vmatprep.subr.mxu0 0.0
        %639 = vmatpush1.xpose.msra.mxu0 %v622
        %640 = vmatprep.subr.mxu0 0.0
        %641 = vmatpush1.xpose.msra.mxu0 %v623
        %642 = vmatprep.subr.mxu0 0.0
        %643 = vmatpush1.xpose.msra.mxu0 %v624
        %644 = vmatprep.subr.mxu0 0.0
        %645 = vmatpush1.xpose.msra.mxu0 %v625
        %646 = vmatprep.subr.mxu0 0.0
        %647 = vmatpush1.xpose.msra.mxu0 %v626
        %648 = vmatprep.subr.mxu0 0.0
        %649 = vmatpush1.xpose.msra.mxu0 %v627
        %650 = vmatprep.subr.mxu0 0.0
        %651 = vmatpush1.xpose.msra.mxu0 %v628
        %652 = vmatprep.subr.mxu0 0.0
        %653 = vmatpush1.xpose.msra.mxu0 %v629
        %654 = vmatprep.subr.mxu0 0.0
        %655 = vmatpush1.xpose.msra.mxu0 %v630
        %656 = vmatprep.subr.mxu0 0.0
        %657 = vmatpush1.xpose.msra.mxu0 %v631
        %658 = vmatprep.subr.mxu0 0.0
        %659 = vmatpush1.xpose.msra.mxu0 %v632
        %660 = vmatprep.subr.mxu0 0.0
        %661 = vmatpush1.xpose.msra.mxu0 %v633
        %662 = vmatprep.subr.mxu0 0.0
        %663 = vmatpush1.xpose.msra.mxu0 %v634
        %664 = vmatprep.subr.mxu0 0.0
        %665 = vmatpush1.xpose.msra.mxu0 %v635
        %666 = vmatprep.subr.mxu0 0.0
        %667 = vmatpush1.xpose.msra.mxu0 %v636
        %668 = vmatprep.subr.mxu0 0.0
        %669 = vmatpush1.xpose.msra.mxu0 %v637
        %670 = vmatprep.subr.mxu0 0.0
        %671 = vmatpush1.xpose.msra.mxu0 0.0
        %672 = vmatprep.subr.mxu0 0.0
        %673 = vmatpush1.xpose.msra.mxu0 0.0
        %674 = vmatprep.subr.mxu0 0.0
        %675 = vmatpush1.xpose.msra.mxu0 0.0
        %676 = vmatprep.subr.mxu0 0.0
        %677 = vmatpush1.xpose.msra.mxu0 0.0
        %678 = vmatprep.subr.mxu0 0.0
        %679 = vmatpush1.xpose.msra.mxu0 0.0
        %680 = vmatprep.subr.mxu0 0.0
        %681 = vmatpush1.xpose.msra.mxu0 0.0
        %682 = vmatprep.subr.mxu0 0.0
        %683 = vmatpush1.xpose.msra.mxu0 0.0
        %684 = vmatprep.subr.mxu0 0.0
        %685 = vmatpush1.xpose.msra.mxu0 0.0
        %686 = vmatprep.subr.mxu0 0.0
        %687 = vmatpush1.xpose.msra.mxu0 0.0
        %688 = vmatprep.subr.mxu0 0.0
        %689 = vmatpush1.xpose.msra.mxu0 0.0
        %690 = vmatprep.subr.mxu0 0.0
        %691 = vmatpush1.xpose.msra.mxu0 0.0
        %692 = vmatprep.subr.mxu0 0.0
        %693 = vmatpush1.xpose.msra.mxu0 0.0
        %694 = vmatprep.subr.mxu0 0.0
        %695 = vmatpush1.xpose.msra.mxu0 0.0
        %696 = vmatprep.subr.mxu0 0.0
        %697 = vmatpush1.xpose.msra.mxu0 0.0
        %698 = vmatprep.subr.mxu0 0.0
        %699 = vmatpush1.xpose.msra.mxu0 0.0
        %700 = vmatprep.subr.mxu0 0.0
        %701 = vmatpush1.xpose.msra.mxu0 0.0
        %702 = vmatprep.mubr.f32.mxu0 0.0
        %703 = vmatmul.mubr.f32.gmra.mrb[0].mxu0 %v615
        %v704 = vpop.f32.mrb[0].mxu0
        %v705 = vadd.f32 0.0, %v704
        %v706 = vpop.f32.mrb[0].mxu0
        %707 = vdwg.mxu0
        %v708 = vmul.f32 %v621, 100.0
        %v709 = vmul.f32 %v705, %v708
        %v710 = vlaneseq
        %v711 = vand.u32 %v710, 127
        %vm712 = vcmp.lt.s32.totalorder %v711, 8
        %v713 = vsel %vm712, %v709, -1e+30
        %714 = vmax.xlane.f32.xlu0 %v713
        %v715 = vpop.xlane.xlu0 %714
        %v716 = vsub.f32 %v713, %v715
        %v717 = vmul.f32 %v716, 1.442695
        %v718 = vpow.pop %v717
        %719 = vadd.xlane.f32.xlu0 %v718
        %v720 = vpop.xlane.xlu0 %719
        %v721 = vlog2.pop %v720
        %v722 = vmul.f32 %v721, 0.6931472
        %v723 = vadd.f32 %v715, %v722
        %v724 = vsub.f32 %v713, %v723
        %v725 = vadd.f32 %v724, %v616
        %726 = vst [vmem:[%s321] sm:$0xff] %v725
        %s727 = sand.u32 %s150, 1
        %s728 = scalar_lea.sflag [#allocation5], %s727
        %s729 = sand.u32 %s150, 1
        %s730 = smul.addr %s729, 8
        %s731 = scalar_lea.vmem [#allocation11], %s730
        // Predicated region
        $region57: #{tpu_custom_call.1} parent=35 // pred_check
          %p732 = pneg %p160
        $region58: #{tpu_custom_call.1} parent=35 // pred_check_branch
          %734 = sbr.rel (%p732) target = $region60
        $region59: #{tpu_custom_call.1} parent=35 // pred_region
          %s736 = ssub.s32 128, 128
          %737 = vsyncadd %s728, %s736
          %s738 = sadd.s32 %s30, %s29
          %s739 = smul.addr %s738, 128
          %s740 = scalar_lea.hbm %s4, %s739
          %s742 = sshll.u32 %s731, 4
          %s743 = int_to_ptr.vmem [resolvable:$true] %s742
          %745 = dma.vmem_to_hbm [thread:$0]  %s743, 128, %s740, %s728
        $region60: #{tpu_custom_call.1} parent=35 // pred_fallthru
          _
      $region36: #{tpu_custom_call.1} parent=5 // pred_fallthru
        _
      %p746 = scmp.le.s32.totalorder 2, %s20
      // Predicated region
      $region61: #{tpu_custom_call.1} parent=5 // pred_check
        %p747 = pneg %p746
      $region62: #{tpu_custom_call.1} parent=5 // pred_check_branch
        %749 = sbr.rel (%p747) target = $region64
      $region63: #{tpu_custom_call.1} parent=5 // pred_region
        %s750 = ssub.s32 %s20, 2
        // Predicated region
        $region65: #{tpu_custom_call.1} parent=63 // pred_check
          %p751 = pneg %p166
        $region66: #{tpu_custom_call.1} parent=63 // pred_check_branch
          %753 = sbr.rel (%p751) target = $region68
        $region67: #{tpu_custom_call.1} parent=63 // pred_region
          %s754 = sand.u32 %s151, 1
          %s755 = scalar_lea.sflag [#allocation5], %s754
          %s756 = sand.u32 %s151, 1
          %s757 = smul.addr %s756, 8
          %s758 = scalar_lea.vmem [#allocation11], %s757
          %759 = dma.done %s755, 128
        $region68: #{tpu_custom_call.1} parent=63 // pred_fallthru
          _
      $region64: #{tpu_custom_call.1} parent=5 // pred_fallthru
        _
    $region6: #{tpu_custom_call.1} parent=1 // loop_footer
      %s24 = sadd.s32 1, %s20
    $region7: #{tpu_custom_call.1} parent=1 // loop_footer_branch
      %19 = sbr.rel target = $region3
    $region8: #{tpu_custom_call.1} parent=1 // loop_exit
      _
    %760 = vsyncpa [#allocation4], 1
    %s761 = scalar_lea.sflag [#allocation4], 1
    %762 = vsyncpa %s761, 1
    %763 = vsyncpa [#allocation7], 1
    %s764 = scalar_lea.sflag [#allocation7], 1
    %765 = vsyncpa %s764, 1
    %766 = vsyncpa [#allocation10], 1
    %767 = vsyncpa [#allocation5], 1
    %s768 = scalar_lea.sflag [#allocation5], 1
    %769 = vsyncpa %s768, 1

</llo_original>
